<compile_context>
chip_gen: v7x
topology: tpu7x:2x2x1
jax: 0.10.0
libtpu: 0.0.40
codegen_flags: <defaults>
</compile_context>

<pallas_src>
import functools

import jax
import jax.numpy as jnp
from jax.experimental import pallas as pl
from jax.experimental.pallas import tpu as pltpu


def _round_up(n, m):
    return ((n + m - 1) // m) * m


# ---------------------------------------------------------------------------
# Kernels
# ---------------------------------------------------------------------------

def _epilogue(h, wcat_ref, bcat_ref, eps_ref, z_ref, mu_ref, kl_ref,
              latent_dims, latent_pad):
    """Fused mean|logstd projection + reparameterisation + KL partials."""
    # Second stage stays f32 (only x / w1 are bf16-rounded).
    p = jnp.dot(h, wcat_ref[...], preferred_element_type=jnp.float32) + bcat_ref[...]
    mu = p[:, :latent_pad]
    logstd = p[:, latent_pad:]
    sigma = jnp.exp(logstd)

    mu_ref[...] = mu
    z_ref[...] = mu + sigma * eps_ref[...]            # padded eps lanes are 0

    # KL terms; padded lanes (mu=0, logstd=0 would each add 0.5) are masked.
    lane = jax.lax.broadcasted_iota(jnp.int32, mu.shape, 1)
    kl_terms = jnp.where(lane < latent_dims,
                         sigma * sigma + mu * mu - logstd - 0.5, 0.0)
    # Per-lane partials only (sublane reduce); cross-lane reduce in wrapper.
    partial = jnp.sum(kl_terms, axis=0)               # [latent_pad]
    kl_ref[...] = jnp.broadcast_to(partial[None, None, :], kl_ref.shape)


def _encoder_kernel_resident(x_ref, w1_ref, b1_ref, wcat_ref, bcat_ref, eps_ref,
                             z_ref, mu_ref, kl_ref, *, latent_dims, latent_pad):
    """Whole K reduction in one grid step; w1 stays VMEM-resident."""
    xb = x_ref[...].astype(jnp.bfloat16)              # f32 DMA -> VPU bf16 cast
    h = jnp.dot(xb, w1_ref[...], preferred_element_type=jnp.float32)
    h = jnp.maximum(h + b1_ref[...], 0.0)             # [tb, H] f32
    _epilogue(h, wcat_ref, bcat_ref, eps_ref, z_ref, mu_ref, kl_ref,
              latent_dims, latent_pad)


def _encoder_kernel_tiled(x_ref, w1_ref, b1_ref, wcat_ref, bcat_ref, eps_ref,
                          z_ref, mu_ref, kl_ref, h_acc,
                          *, latent_dims, latent_pad):
    """Fallback for huge weights: K tiled over grid axis 1 with f32 accumulator."""
    k = pl.program_id(1)
    part = jnp.dot(x_ref[...].astype(jnp.bfloat16), w1_ref[...],
                   preferred_element_type=jnp.float32)

    @pl.when(k == 0)
    def _():
        h_acc[...] = part            # init folded into first k step (no zero-fill)

    @pl.when(k != 0)
    def _():
        h_acc[...] += part

    @pl.when(k == pl.num_programs(1) - 1)
    def _():
        h = jnp.maximum(h_acc[...] + b1_ref[...], 0.0)
        _epilogue(h, wcat_ref, bcat_ref, eps_ref, z_ref, mu_ref, kl_ref,
                  latent_dims, latent_pad)


# ---------------------------------------------------------------------------
# One-time parameter packing (call once, NOT per forward pass).
# ---------------------------------------------------------------------------

def prepare_params(params):
    """Pack f32 [in,out] weights once: bf16 w1 (K padded to a 128 multiple),
    fused f32 (wm | ws) projection padded to lane-dense 2*LP columns."""
    w1 = params["w1"]
    F, H = w1.shape
    L = params["wm"].shape[1]
    LP = _round_up(L, 128)              # no silent overlap for L > 128
    Fp = _round_up(F, 128)

    w1p = jnp.pad(w1, ((0, Fp - F), (0, 0))).astype(jnp.bfloat16)   # [Fp, H]
    b1 = params["b1"].astype(jnp.float32).reshape(1, H)

    wcat = jnp.zeros((H, 2 * LP), jnp.float32)
    wcat = wcat.at[:, :L].set(params["wm"]).at[:, LP:LP + L].set(params["ws"])
    bcat = jnp.zeros((1, 2 * LP), jnp.float32)
    bcat = bcat.at[:, :L].set(params["bm"]).at[:, LP:LP + L].set(params["bs"])

    return {"w1": w1p, "b1": b1, "wcat": wcat, "bcat": bcat,
            "F": F, "Fp": Fp, "H": H, "L": L, "LP": LP}


# ---------------------------------------------------------------------------
# Generation-aware budgets
# ---------------------------------------------------------------------------

def _vmem_budget_bytes():
    cap = 64 * 1024 * 1024              # conservative (v7x) if detection fails
    try:
        info = pltpu.get_tpu_info()
        cap = int(getattr(info, "vmem_capacity_bytes", cap))
    except Exception:
        pass
    # Leave headroom: 48 MiB on 64 MiB parts, ~96 MiB on 128 MiB parts.
    return min(cap * 3 // 4, 100 * 1024 * 1024)


def _is_v7x():
    try:
        kind = jax.devices()[0].device_kind.lower()
    except Exception:
        return False
    return ("v7" in kind) or ("7x" in kind)


# ---------------------------------------------------------------------------
# Forward wrapper
# ---------------------------------------------------------------------------

def variational_encoder_forward(x, packed, eps, return_latent=False, *,
                                force_ktiled=False, max_tk=None):
    """x: NCHW f32. packed: prepare_params(...) output. eps: [B, L] N(0,1)."""
    F, Fp, H, L, LP = (packed[k] for k in ("F", "Fp", "H", "L", "LP"))
    B = x.shape[0]
    x2d = x.reshape(B, -1).astype(jnp.float32)         # torch.flatten(x, 1)
    assert x2d.shape[1] == F

    # Pad the reduction dim only when F is not a 128 multiple (padded w1 rows
    # are zero, so padded x values are irrelevant). f32 in; bf16 cast in-kernel.
    x_p = x2d if F == Fp else jnp.pad(x2d, ((0, 0), (0, Fp - F)))
    eps_p = eps.astype(jnp.float32)
    if LP != L:
        eps_p = jnp.pad(eps_p, ((0, 0), (0, LP - L)))

    # Batch tiling: prefer multiples of 16 (full bf16 sublane packing).
    if B % 16 == 0:
        tb = next(c for c in (256, 128, 64, 32, 16) if c <= B and B % c == 0)
    else:
        tb = B                  # full-dim block (legal; masked stores accepted)
    nbt = B // tb

    vmem_limit = _vmem_budget_bytes()

    if nbt >= 2 and _is_v7x():
        batch_sem = getattr(pltpu, "CORE_PARALLEL", "parallel")
    else:
        batch_sem = "parallel"

    def resident_bytes():
        return (2 * tb * Fp * 4          # x tile (f32, double buffered)
                + 2 * Fp * H * 2         # w1 (bf16, resident)
                + 2 * H * 2 * LP * 4     # wcat (f32, resident)
                + 2 * 3 * tb * LP * 4    # z, mu, eps
                + 2 * 8 * LP * 4         # kl slab
                + 4 * tb * H * 4         # h / p temporaries headroom
                + (2 << 20))

    use_resident = (not force_ktiled) and resident_bytes() <= int(vmem_limit * 0.8)

    out_shapes = (
        jax.ShapeDtypeStruct((B, LP), jnp.float32),        # z (lane-padded)
        jax.ShapeDtypeStruct((B, LP), jnp.float32),        # mu (lane-padded)
        jax.ShapeDtypeStruct((nbt, 8, LP), jnp.float32),   # kl per-lane partials
    )
    args = (x_p, packed["w1"], packed["b1"], packed["wcat"], packed["bcat"], eps_p)

    if use_resident:
        kernel = functools.partial(_encoder_kernel_resident,
                                   latent_dims=L, latent_pad=LP)
        grid_spec = pltpu.PrefetchScalarGridSpec(
            num_scalar_prefetch=0,
            grid=(nbt,),
            in_specs=[
                pl.BlockSpec((tb, Fp), lambda i: (i, 0)),        # x (f32)
                pl.BlockSpec((Fp, H), lambda i: (0, 0)),         # w1 resident
                pl.BlockSpec((1, H), lambda i: (0, 0)),          # b1
                pl.BlockSpec((H, 2 * LP), lambda i: (0, 0)),     # wm|ws resident
                pl.BlockSpec((1, 2 * LP), lambda i: (0, 0)),     # bm|bs
                pl.BlockSpec((tb, LP), lambda i: (i, 0)),        # eps
            ],
            out_specs=(
                pl.BlockSpec((tb, LP), lambda i: (i, 0)),
                pl.BlockSpec((tb, LP), lambda i: (i, 0)),
                pl.BlockSpec((1, 8, LP), lambda i: (i, 0, 0)),
            ),
            scratch_shapes=[],
        )
        sems = (batch_sem,)
    else:
        # TODO(synk): on v7x an in-body emit_pipeline over k chunks could use
        # MRB accumulation instead of VMEM round-trips on the h accumulator.
        big_vmem = vmem_limit >= 72 * 1024 * 1024
        cands = (2048, 1024, 512, 256, 128) if big_vmem else (1024, 512, 256, 128)
        if max_tk is not None:
            cands = tuple(c for c in cands if c <= max_tk)

        def tiled_fits(tk):
            return (2 * tb * tk * 4 + 2 * tk * H * 2
                    + 2 * H * 2 * LP * 4 + 2 * 3 * tb * LP * 4
                    + tb * H * 4 + (2 << 20)) <= int(vmem_limit * 0.8)

        tk = next((c for c in cands if Fp % c == 0 and tiled_fits(c)), 128)
        nkt = Fp // tk

        kernel = functools.partial(_encoder_kernel_tiled,
                                   latent_dims=L, latent_pad=LP)
        grid_spec = pltpu.PrefetchScalarGridSpec(
            num_scalar_prefetch=0,
            grid=(nbt, nkt),
            in_specs=[
                pl.BlockSpec((tb, tk), lambda i, k: (i, k)),     # x (f32)
                pl.BlockSpec((tk, H), lambda i, k: (k, 0)),      # w1 k-tile
                pl.BlockSpec((1, H), lambda i, k: (0, 0)),       # b1
                pl.BlockSpec((H, 2 * LP), lambda i, k: (0, 0)),  # wm|ws resident
                pl.BlockSpec((1, 2 * LP), lambda i, k: (0, 0)),  # bm|bs
                pl.BlockSpec((tb, LP), lambda i, k: (i, 0)),     # eps
            ],
            out_specs=(
                pl.BlockSpec((tb, LP), lambda i, k: (i, 0)),
                pl.BlockSpec((tb, LP), lambda i, k: (i, 0)),
                pl.BlockSpec((1, 8, LP), lambda i, k: (i, 0, 0)),
            ),
            scratch_shapes=[pltpu.VMEM((tb, H), jnp.float32)],   # h accumulator
        )
        sems = (batch_sem, "arbitrary")

    z_p, mu_p, kl_p = pl.pallas_call(
        kernel,
        out_shape=out_shapes,
        grid_spec=grid_spec,
        compiler_params=pltpu.CompilerParams(
            dimension_semantics=sems,
            vmem_limit_bytes=vmem_limit,
        ),
    )(*args)

    mu = mu_p[:, :L]
    if return_latent:
        return mu
    z = z_p[:, :L]
    kl = jnp.sum(kl_p[:, 0, :])      # cheap cross-lane / cross-tile reduce here
    return z, kl


# ---------------------------------------------------------------------------
# Init + self-test
# ---------------------------------------------------------------------------

def init_params(key, in_dims, hidden_dims, latent_dims):
    """Deterministic init mimicking nn.Linear's U(-1/sqrt(fan_in), 1/sqrt(fan_in))."""
    ks = jax.random.split(key, 6)

    def lin(kw, kb, fan_in, fan_out):
        bound = 1.0 / jnp.sqrt(fan_in)
        w = jax.random.uniform(kw, (fan_in, fan_out), jnp.float32, -bound, bound)
        b = jax.random.uniform(kb, (1, fan_out), jnp.float32, -bound, bound)
        return w, b

    w1, b1 = lin(ks[0], ks[1], in_dims, hidden_dims)
    wm, bm = lin(ks[2], ks[3], hidden_dims, latent_dims)
    ws, bs = lin(ks[4], ks[5], hidden_dims, latent_dims)
    return {"w1": w1, "b1": b1, "wm": wm, "bm": bm, "ws": ws, "bs": bs}


if __name__ == "__main__":
    # NCHW input flattened to in_dims = C*H*W (= 1024).
    B, C, Hs, Ws = 2, 4, 16, 16
    in_dims = C * Hs * Ws
    hidden_dims = 128
    latent_dims = 3

    root = jax.random.PRNGKey(0)
    k_x, k_p, k_eps = jax.random.split(root, 3)

    x = jax.random.normal(k_x, (B, C, Hs, Ws), jnp.float32)
    params = init_params(k_p, in_dims, hidden_dims, latent_dims)
    packed = prepare_params(params)          # one-time packing (hoisted out of forward)

    # TODO(synk): eps is passed explicitly (torch samples N(0,1) inside forward);
    # it could be generated in-kernel with pltpu.prng_seed / prng_random_bits.
    eps = jax.random.normal(k_eps, (B, latent_dims), jnp.float32)

    # Resident-w1 path (auto-selected at these shapes) + return_latent path.
    z, kl = variational_encoder_forward(x, packed, eps)
    mu = variational_encoder_forward(x, packed, eps, return_latent=True)
    # Tiled-K fallback path (forced, tk=256 -> 4 k-steps) for coverage.
    z_t, kl_t = variational_encoder_forward(x, packed, eps,
                                            force_ktiled=True, max_tk=256)
    jax.block_until_ready((z, kl, mu, z_t, kl_t))

    # Pure-JAX reference matching kernel numerics: x / w1 bf16-rounded (MXU
    # accumulates bf16 products exactly in f32); second stage stays f32.
    f32 = jnp.float32
    x2d = x.reshape(B, -1)
    xb = x2d.astype(jnp.bfloat16).astype(f32)
    w1b = params["w1"].astype(jnp.bfloat16).astype(f32)
    h_ref = jnp.maximum(xb @ w1b + params["b1"], 0.0)
    mu_ref = h_ref @ params["wm"] + params["bm"]
    logstd_ref = h_ref @ params["ws"] + params["bs"]
    sigma_ref = jnp.exp(logstd_ref)
    z_ref = mu_ref + sigma_ref * eps
    kl_ref = jnp.sum(sigma_ref ** 2 + mu_ref ** 2 - logstd_ref - 0.5)

    assert jnp.allclose(mu, mu_ref, atol=1e-2, rtol=1e-2)
    assert jnp.allclose(z, z_ref, atol=1e-2, rtol=1e-2)
    assert jnp.allclose(kl, kl_ref, atol=5e-2, rtol=1e-2)
    assert jnp.allclose(z_t, z_ref, atol=1e-2, rtol=1e-2)
    assert jnp.allclose(kl_t, kl_ref, atol=5e-2, rtol=1e-2)

    print("KERNEL_OK")
</pallas_src>

<mosaic_0001>
module attributes {stable_mosaic.version = 11 : i64} {
  func.func @_encoder_kernel_resident(%arg0: i32, %arg1: memref<2x1024xf32, #tpu.memory_space<vmem>>, %arg2: memref<1024x128xbf16, #tpu.memory_space<vmem>>, %arg3: memref<1x128xf32, #tpu.memory_space<vmem>>, %arg4: memref<128x256xf32, #tpu.memory_space<vmem>>, %arg5: memref<1x256xf32, #tpu.memory_space<vmem>>, %arg6: memref<2x128xf32, #tpu.memory_space<vmem>>, %arg7: memref<2x128xf32, #tpu.memory_space<vmem>>, %arg8: memref<2x128xf32, #tpu.memory_space<vmem>>, %arg9: memref<1x8x128xf32, #tpu.memory_space<vmem>>) attributes {dimension_semantics = [#tpu.dimension_semantics<parallel>], iteration_bounds = array<i64: 1>, scalar_prefetch = 0 : i64, scratch_operands = 0 : i64, tpu.core_type = #tpu.core_type<tc>, window_params = [{transform_indices = @transform_0, window_bounds = array<i64: 2, 1024>}, {pipeline_mode = #tpu.pipeline_mode<synchronous>, transform_indices = @transform_1, window_bounds = array<i64: 1024, 128>}, {pipeline_mode = #tpu.pipeline_mode<synchronous>, transform_indices = @transform_2, window_bounds = array<i64: 1, 128>}, {pipeline_mode = #tpu.pipeline_mode<synchronous>, transform_indices = @transform_3, window_bounds = array<i64: 128, 256>}, {pipeline_mode = #tpu.pipeline_mode<synchronous>, transform_indices = @transform_4, window_bounds = array<i64: 1, 256>}, {transform_indices = @transform_5, window_bounds = array<i64: 2, 128>}, {transform_indices = @transform_6, window_bounds = array<i64: 2, 128>}, {transform_indices = @transform_7, window_bounds = array<i64: 2, 128>}, {transform_indices = @transform_8, window_bounds = array<i64: 1, 8, 128>}]} {
    %c0 = arith.constant 0 : index
    %c0_0 = arith.constant 0 : index
    %0 = vector.load %arg1[%c0, %c0_0] : memref<2x1024xf32, #tpu.memory_space<vmem>>, vector<2x1024xf32>
    %1 = arith.truncf %0 : vector<2x1024xf32> to vector<2x1024xbf16>
    %c0_1 = arith.constant 0 : index
    %c0_2 = arith.constant 0 : index
    %2 = vector.load %arg2[%c0_1, %c0_2] : memref<1024x128xbf16, #tpu.memory_space<vmem>>, vector<1024x128xbf16>
    %cst = arith.constant dense<0.000000e+00> : vector<2x128xf32>
    %3 = tpu.matmul %1, %2, %cst {dimension_numbers = #tpu.dot_dimension_numbers<[1], [0], [0], [1], [0, 0, 1, 1], [], []>} : vector<2x1024xbf16>, vector<1024x128xbf16>, vector<2x128xf32> -> vector<2x128xf32>
    %c0_3 = arith.constant 0 : index
    %c0_4 = arith.constant 0 : index
    %4 = vector.load %arg3[%c0_3, %c0_4] : memref<1x128xf32, #tpu.memory_space<vmem>>, vector<1x128xf32>
    %5 = vector.broadcast %4 : vector<1x128xf32> to vector<2x128xf32>
    %6 = arith.addf %3, %5 : vector<2x128xf32>
    %cst_5 = arith.constant 0.000000e+00 : f32
    %7 = vector.broadcast %cst_5 : f32 to vector<2x128xf32>
    %8 = arith.maximumf %6, %7 : vector<2x128xf32>
    %c0_6 = arith.constant 0 : index
    %c0_7 = arith.constant 0 : index
    %9 = vector.load %arg4[%c0_6, %c0_7] : memref<128x256xf32, #tpu.memory_space<vmem>>, vector<128x256xf32>
    %cst_8 = arith.constant dense<0.000000e+00> : vector<2x256xf32>
    %10 = tpu.matmul %8, %9, %cst_8 {dimension_numbers = #tpu.dot_dimension_numbers<[1], [0], [0], [1], [0, 0, 1, 1], [], []>} : vector<2x128xf32>, vector<128x256xf32>, vector<2x256xf32> -> vector<2x256xf32>
    %c0_9 = arith.constant 0 : index
    %c0_10 = arith.constant 0 : index
    %11 = vector.load %arg5[%c0_9, %c0_10] : memref<1x256xf32, #tpu.memory_space<vmem>>, vector<1x256xf32>
    %12 = vector.broadcast %11 : vector<1x256xf32> to vector<2x256xf32>
    %13 = arith.addf %10, %12 : vector<2x256xf32>
    %14 = vector.extract_strided_slice %13 {offsets = [0, 0], sizes = [2, 128], strides = [1, 1]} : vector<2x256xf32> to vector<2x128xf32>
    %15 = vector.extract_strided_slice %13 {offsets = [0, 128], sizes = [2, 128], strides = [1, 1]} : vector<2x256xf32> to vector<2x128xf32>
    %16 = math.exp %15 : vector<2x128xf32>
    %c0_11 = arith.constant 0 : index
    %c0_12 = arith.constant 0 : index
    %17 = vector.load %arg8[%c0_11, %c0_12] : memref<2x128xf32, #tpu.memory_space<vmem>>, vector<2x128xf32>
    tpu.vector_store %arg8[%c0_11, %c0_12], %14 {strides = array<i32>} : memref<2x128xf32, #tpu.memory_space<vmem>>, vector<2x128xf32>,
    %c0_13 = arith.constant 0 : index
    %c0_14 = arith.constant 0 : index
    %18 = vector.load %arg6[%c0_13, %c0_14] : memref<2x128xf32, #tpu.memory_space<vmem>>, vector<2x128xf32>
    %19 = arith.mulf %16, %18 : vector<2x128xf32>
    %20 = arith.addf %14, %19 : vector<2x128xf32>
    %c0_15 = arith.constant 0 : index
    %c0_16 = arith.constant 0 : index
    %21 = vector.load %arg7[%c0_15, %c0_16] : memref<2x128xf32, #tpu.memory_space<vmem>>, vector<2x128xf32>
    tpu.vector_store %arg7[%c0_15, %c0_16], %20 {strides = array<i32>} : memref<2x128xf32, #tpu.memory_space<vmem>>, vector<2x128xf32>,
    %22 = tpu.iota {dimensions = array<i32: 1>} : vector<2x128xi32>
    %c3_i32 = arith.constant 3 : i32
    %23 = vector.broadcast %c3_i32 : i32 to vector<2x128xi32>
    %24 = arith.cmpi slt, %22, %23 : vector<2x128xi32>
    %25 = arith.mulf %16, %16 : vector<2x128xf32>
    %26 = arith.mulf %14, %14 : vector<2x128xf32>
    %27 = arith.addf %25, %26 : vector<2x128xf32>
    %28 = arith.subf %27, %15 : vector<2x128xf32>
    %cst_17 = arith.constant 5.000000e-01 : f32
    %29 = vector.broadcast %cst_17 : f32 to vector<2x128xf32>
    %30 = arith.subf %28, %29 : vector<2x128xf32>
    %cst_18 = arith.constant 0.000000e+00 : f32
    %31 = vector.broadcast %cst_18 : f32 to vector<2x128xf32>
    %32 = arith.select %24, %30, %31 : vector<2x128xi1>, vector<2x128xf32>
    %cst_19 = arith.constant dense<0.000000e+00> : vector<128xf32>
    %33 = vector.multi_reduction <add>, %32, %cst_19 [0] : vector<2x128xf32> to vector<128xf32>
    %34 = vector.shape_cast %33 : vector<128xf32> to vector<1x1x128xf32>
    %35 = vector.shape_cast %34 : vector<1x1x128xf32> to vector<1x1x128xf32>
    %36 = vector.broadcast %35 : vector<1x1x128xf32> to vector<1x8x128xf32>
    %c0_20 = arith.constant 0 : index
    %c0_21 = arith.constant 0 : index
    %c0_22 = arith.constant 0 : index
    %37 = vector.load %arg9[%c0_20, %c0_21, %c0_22] : memref<1x8x128xf32, #tpu.memory_space<vmem>>, vector<1x8x128xf32>
    tpu.vector_store %arg9[%c0_20, %c0_21, %c0_22], %36 {strides = array<i32>} : memref<1x8x128xf32, #tpu.memory_space<vmem>>, vector<1x8x128xf32>,
    return
  }
  func.func @transform_0(%arg0: i32) -> (i32, i32) {
    %c0_i32 = arith.constant 0 : i32
    %c0_i32_0 = arith.constant 0 : i32
    return %arg0, %c0_i32 : i32, i32
  }
  func.func @transform_1(%arg0: i32) -> (i32, i32) {
    %c0_i32 = arith.constant 0 : i32
    %c0_i32_0 = arith.constant 0 : i32
    %c0_i32_1 = arith.constant 0 : i32
    return %c0_i32, %c0_i32_0 : i32, i32
  }
  func.func @transform_2(%arg0: i32) -> (i32, i32) {
    %c0_i32 = arith.constant 0 : i32
    %c0_i32_0 = arith.constant 0 : i32
    %c0_i32_1 = arith.constant 0 : i32
    return %c0_i32, %c0_i32_0 : i32, i32
  }
  func.func @transform_3(%arg0: i32) -> (i32, i32) {
    %c0_i32 = arith.constant 0 : i32
    %c0_i32_0 = arith.constant 0 : i32
    %c0_i32_1 = arith.constant 0 : i32
    return %c0_i32, %c0_i32_0 : i32, i32
  }
  func.func @transform_4(%arg0: i32) -> (i32, i32) {
    %c0_i32 = arith.constant 0 : i32
    %c0_i32_0 = arith.constant 0 : i32
    %c0_i32_1 = arith.constant 0 : i32
    return %c0_i32, %c0_i32_0 : i32, i32
  }
  func.func @transform_5(%arg0: i32) -> (i32, i32) {
    %c0_i32 = arith.constant 0 : i32
    %c0_i32_0 = arith.constant 0 : i32
    return %arg0, %c0_i32 : i32, i32
  }
  func.func @transform_6(%arg0: i32) -> (i32, i32) {
    %c0_i32 = arith.constant 0 : i32
    %c0_i32_0 = arith.constant 0 : i32
    return %arg0, %c0_i32 : i32, i32
  }
  func.func @transform_7(%arg0: i32) -> (i32, i32) {
    %c0_i32 = arith.constant 0 : i32
    %c0_i32_0 = arith.constant 0 : i32
    return %arg0, %c0_i32 : i32, i32
  }
  func.func @transform_8(%arg0: i32) -> (i32, i32, i32) {
    %c0_i32 = arith.constant 0 : i32
    %c0_i32_0 = arith.constant 0 : i32
    %c0_i32_1 = arith.constant 0 : i32
    return %arg0, %c0_i32, %c0_i32_0 : i32, i32, i32
  }
}

</mosaic_0001>

<llo_original>
// kernel: tpu_custom_call.1
$region0: #{tpu_custom_call.1}
  #allocation0 [shape = 'u32[]', space=smem, size = 0x4, offset = 0x4, fixed_abs, tag = 'smem constant byte address 0x4 - core index']
  #allocation1 [shape = 'u32[144,128]{1,0:T(1,128)}', space=vmem, size = 0x12000, scoped, tag = 'internal scratch']
  %s0 = inlined_call_operand.hbm [shape: f32[2,1024], index: 0, kind: input, shape index: {}]
  %s1 = inlined_call_operand.hbm [shape: bf16[1024,128], index: 1, kind: input, shape index: {}]
  %s2 = inlined_call_operand.vmem [shape: f32[1,128], index: 2, kind: input, shape index: {}]
  %s3 = inlined_call_operand.hbm [shape: f32[128,256], index: 3, kind: input, shape index: {}]
  %s4 = inlined_call_operand.vmem [shape: f32[1,256], index: 4, kind: input, shape index: {}]
  %s5 = inlined_call_operand.vmem [shape: f32[2,128], index: 5, kind: input, shape index: {}]
  %s6 = inlined_call_operand.hbm [shape: f32[2,128], index: 6, kind: output, shape index: {0}]
  %s7 = inlined_call_operand.hbm [shape: f32[2,128], index: 7, kind: output, shape index: {1}]
  %s8 = inlined_call_operand.hbm [shape: f32[1,8,128], index: 8, kind: output, shape index: {2}]
  %9 = xla_tuple %s6, %s7, %s8
  %s10 = sld [smem:[#allocation0]]
  $region62: #{tpu_custom_call.1} parent=0
    _
  %s12 = ssub.s32 1, %s10
  %s13 = scalar_select 0, %s12, %s10
  $region1: #{tpu_custom_call.1} parent=0
    #allocation2 [shape = 'u8[8192]{0}', space=vmem, size = 0x2000, scoped, tag = 'input window, operand 0, single buffered']
    #allocation3 [shape = 's32[1]{0}', space=sflag, size = 0x4, scoped, tag = 'scoped memory for tpu_custom_call.1']
    #allocation4 [shape = 's32[1]{0}', space=sflag, size = 0x4, scoped, tag = 'scoped memory for tpu_custom_call.1']
    #allocation5 [shape = 'u8[262144]{0}', space=vmem, size = 0x40000, scoped, tag = 'input window, operand 1, single buffered']
    #allocation6 [shape = 's32[1]{0}', space=sflag, size = 0x4, scoped, tag = 'scoped memory for tpu_custom_call.1']
    #allocation7 [shape = 'u8[131072]{0}', space=vmem, size = 0x20000, scoped, tag = 'input window, operand 3, single buffered']
    #allocation8 [shape = 'u8[1024]{0}', space=vmem, size = 0x400, scoped, tag = 'output window, operand 0, single buffered']
    #allocation9 [shape = 'u8[1024]{0}', space=vmem, size = 0x400, scoped, tag = 'output window, operand 1, single buffered']
    #allocation10 [shape = 's32[1]{0}', space=sflag, size = 0x4, scoped, tag = 'scoped memory for tpu_custom_call.1']
    #allocation11 [shape = 'u8[4096]{0}', space=vmem, size = 0x1000, scoped, tag = 'output window, operand 2, single buffered']
    %14 = vsyncpa [#allocation3], 0
    %15 = vsyncpa [#allocation6], 0
    %16 = vsyncpa [#allocation4], 0
    %17 = vsyncpa [#allocation10], 0
    // Predicated region
    $region2: #{tpu_custom_call.1} parent=1 // pred_check
      _
    $region3: #{tpu_custom_call.1} parent=1 // pred_check_branch
      %19 = sbr.rel (0) target = $region5
    $region4: #{tpu_custom_call.1} parent=1 // pred_region
      %s21 = ssub.s32 256, 256
      %22 = vsyncadd [#allocation3], %s21
      %s24 = sshll.u32 [#allocation2], 4
      %s25 = int_to_ptr.vmem [resolvable:$true] %s24
      %27 = dma.hbm_to_vmem [thread:$0]  %s0, 256, %s25, [#allocation3]
    $region5: #{tpu_custom_call.1} parent=1 // pred_fallthru
      _
    // Predicated region
    $region6: #{tpu_custom_call.1} parent=1 // pred_check
      _
    $region7: #{tpu_custom_call.1} parent=1 // pred_check_branch
      %29 = sbr.rel (0) target = $region9
    $region8: #{tpu_custom_call.1} parent=1 // pred_region
      %s31 = ssub.s32 8192, 8192
      %32 = vsyncadd [#allocation6], %s31
      %s33 = sshll.u32 [#allocation5], 4
      %s34 = int_to_ptr.vmem [resolvable:$true] %s33
      %39 = dma.hbm_to_vmem [thread:$0]  %s1, 8192, %s34, [#allocation6], 64, 64, 4
    $region9: #{tpu_custom_call.1} parent=1 // pred_fallthru
      _
    // Predicated region
    $region10: #{tpu_custom_call.1} parent=1 // pred_check
      _
    $region11: #{tpu_custom_call.1} parent=1 // pred_check_branch
      %41 = sbr.rel (0) target = $region13
    $region12: #{tpu_custom_call.1} parent=1 // pred_region
      _
    $region13: #{tpu_custom_call.1} parent=1 // pred_fallthru
      _
    // Predicated region
    $region14: #{tpu_custom_call.1} parent=1 // pred_check
      _
    $region15: #{tpu_custom_call.1} parent=1 // pred_check_branch
      %43 = sbr.rel (0) target = $region17
    $region16: #{tpu_custom_call.1} parent=1 // pred_region
      %s45 = ssub.s32 4096, 4096
      %46 = vsyncadd [#allocation6], %s45
      %s47 = sshll.u32 [#allocation7], 4
      %s48 = int_to_ptr.vmem [resolvable:$true] %s47
      %53 = dma.hbm_to_vmem [thread:$0]  %s3, 4096, %s48, [#allocation6], 256, 256, 16
    $region17: #{tpu_custom_call.1} parent=1 // pred_fallthru
      _
    // Predicated region
    $region18: #{tpu_custom_call.1} parent=1 // pred_check
      _
    $region19: #{tpu_custom_call.1} parent=1 // pred_check_branch
      %55 = sbr.rel (0) target = $region21
    $region20: #{tpu_custom_call.1} parent=1 // pred_region
      _
    $region21: #{tpu_custom_call.1} parent=1 // pred_fallthru
      _
    // Predicated region
    $region22: #{tpu_custom_call.1} parent=1 // pred_check
      _
    $region23: #{tpu_custom_call.1} parent=1 // pred_check_branch
      %57 = sbr.rel (0) target = $region25
    $region24: #{tpu_custom_call.1} parent=1 // pred_region
      _
    $region25: #{tpu_custom_call.1} parent=1 // pred_fallthru
      _
    // Predicated region
    $region26: #{tpu_custom_call.1} parent=1 // pred_check
      _
    $region27: #{tpu_custom_call.1} parent=1 // pred_check_branch
      %59 = sbr.rel (0) target = $region29
    $region28: #{tpu_custom_call.1} parent=1 // pred_region
      %60 = dma.done [#allocation3], 256
    $region29: #{tpu_custom_call.1} parent=1 // pred_fallthru
      _
    // Predicated region
    $region30: #{tpu_custom_call.1} parent=1 // pred_check
      _
    $region31: #{tpu_custom_call.1} parent=1 // pred_check_branch
      %62 = sbr.rel (0) target = $region33
    $region32: #{tpu_custom_call.1} parent=1 // pred_region
      %63 = dma.done [#allocation6], 8192
    $region33: #{tpu_custom_call.1} parent=1 // pred_fallthru
      _
    // Predicated region
    $region34: #{tpu_custom_call.1} parent=1 // pred_check
      _
    $region35: #{tpu_custom_call.1} parent=1 // pred_check_branch
      %65 = sbr.rel (0) target = $region37
    $region36: #{tpu_custom_call.1} parent=1 // pred_region
      %66 = dma.done [#allocation6], 4096
    $region37: #{tpu_custom_call.1} parent=1 // pred_fallthru
      _
    %v68 = vld [vmem:[#allocation2] sm:$0xff]
    %v69 = vld [vmem:[#allocation2 + $0x8] sm:$0xff]
    %v72 = vcombine.high %v68, %v68
    %v74 = vunpack.c.l.s4 1983009808
    %v75 = vunpack.c.0.s8 %v74
    %v76 = vlaneseq
    %v77 = vshrl.u32 %v76, 7
    %v78 = vsub.s32 %v75, %v77
    %v79 = vrot.slane %v68, %v78
    %v81 = vunpack.c.l.s4 1983009808
    %v82 = vunpack.c.0.s8 %v81
    %v83 = vlaneseq
    %v84 = vshrl.u32 %v83, 7
    %v85 = vsub.s32 %v82, %v84
    %v86 = vrot.slane %v72, %v85
    %v87 = vcombine.high %v79, %v79
    %v88 = vcombine.high %v86, %v86
    %v89 = vcombine.high %v69, %v69
    %v91 = vunpack.c.l.s4 1983009808
    %v92 = vunpack.c.0.s8 %v91
    %v93 = vlaneseq
    %v94 = vshrl.u32 %v93, 7
    %v95 = vsub.s32 %v92, %v94
    %v96 = vrot.slane %v69, %v95
    %v98 = vunpack.c.l.s4 1983009808
    %v99 = vunpack.c.0.s8 %v98
    %v100 = vlaneseq
    %v101 = vshrl.u32 %v100, 7
    %v102 = vsub.s32 %v99, %v101
    %v103 = vrot.slane %v89, %v102
    %v104 = vcombine.high %v96, %v96
    %v105 = vcombine.high %v103, %v103
    %v114 = vpack.c.bf16 %v79, %v79
    %v115 = vpack.c.bf16 %v87, %v87
    %v116 = vpack.c.bf16 %v86, %v86
    %v117 = vpack.c.bf16 %v88, %v88
    %v118 = vpack.c.bf16 %v96, %v96
    %v119 = vpack.c.bf16 %v104, %v104
    %v120 = vpack.c.bf16 %v103, %v103
    %v121 = vpack.c.bf16 %v105, %v105
    %v122 = vld [vmem:[#allocation5] sm:$0xf]
    %v123 = vld [vmem:[#allocation5 + $0x4] sm:$0xf]
    %v124 = vld [vmem:[#allocation5 + $0x8] sm:$0xf]
    %v125 = vld [vmem:[#allocation5 + $0xc] sm:$0xf]
    %v126 = vld [vmem:[#allocation5 + $0x10] sm:$0xf]
    %v127 = vld [vmem:[#allocation5 + $0x14] sm:$0xf]
    %v128 = vld [vmem:[#allocation5 + $0x18] sm:$0xf]
    %v129 = vld [vmem:[#allocation5 + $0x1c] sm:$0xf]
    %v130 = vld [vmem:[#allocation5 + $0x20] sm:$0xf]
    %v131 = vld [vmem:[#allocation5 + $0x24] sm:$0xf]
    %v132 = vld [vmem:[#allocation5 + $0x28] sm:$0xf]
    %v133 = vld [vmem:[#allocation5 + $0x2c] sm:$0xf]
    %v134 = vld [vmem:[#allocation5 + $0x30] sm:$0xf]
    %v135 = vld [vmem:[#allocation5 + $0x34] sm:$0xf]
    %v136 = vld [vmem:[#allocation5 + $0x38] sm:$0xf]
    %v137 = vld [vmem:[#allocation5 + $0x3c] sm:$0xf]
    %v138 = vld [vmem:[#allocation5 + $0x40] sm:$0xf]
    %v139 = vld [vmem:[#allocation5 + $0x44] sm:$0xf]
    %v140 = vld [vmem:[#allocation5 + $0x48] sm:$0xf]
    %v141 = vld [vmem:[#allocation5 + $0x4c] sm:$0xf]
    %v142 = vld [vmem:[#allocation5 + $0x50] sm:$0xf]
    %v143 = vld [vmem:[#allocation5 + $0x54] sm:$0xf]
    %v144 = vld [vmem:[#allocation5 + $0x58] sm:$0xf]
    %v145 = vld [vmem:[#allocation5 + $0x5c] sm:$0xf]
    %v146 = vld [vmem:[#allocation5 + $0x60] sm:$0xf]
    %v147 = vld [vmem:[#allocation5 + $0x64] sm:$0xf]
    %v148 = vld [vmem:[#allocation5 + $0x68] sm:$0xf]
    %v149 = vld [vmem:[#allocation5 + $0x6c] sm:$0xf]
    %v150 = vld [vmem:[#allocation5 + $0x70] sm:$0xf]
    %v151 = vld [vmem:[#allocation5 + $0x74] sm:$0xf]
    %v152 = vld [vmem:[#allocation5 + $0x78] sm:$0xf]
    %v153 = vld [vmem:[#allocation5 + $0x7c] sm:$0xf]
    %v154 = vld [vmem:[#allocation5 + $0x80] sm:$0xf]
    %v155 = vld [vmem:[#allocation5 + $0x84] sm:$0xf]
    %v156 = vld [vmem:[#allocation5 + $0x88] sm:$0xf]
    %v157 = vld [vmem:[#allocation5 + $0x8c] sm:$0xf]
    %v158 = vld [vmem:[#allocation5 + $0x90] sm:$0xf]
    %v159 = vld [vmem:[#allocation5 + $0x94] sm:$0xf]
    %v160 = vld [vmem:[#allocation5 + $0x98] sm:$0xf]
    %v161 = vld [vmem:[#allocation5 + $0x9c] sm:$0xf]
    %v162 = vld [vmem:[#allocation5 + $0xa0] sm:$0xf]
    %v163 = vld [vmem:[#allocation5 + $0xa4] sm:$0xf]
    %v164 = vld [vmem:[#allocation5 + $0xa8] sm:$0xf]
    %v165 = vld [vmem:[#allocation5 + $0xac] sm:$0xf]
    %v166 = vld [vmem:[#allocation5 + $0xb0] sm:$0xf]
    %v167 = vld [vmem:[#allocation5 + $0xb4] sm:$0xf]
    %v168 = vld [vmem:[#allocation5 + $0xb8] sm:$0xf]
    %v169 = vld [vmem:[#allocation5 + $0xbc] sm:$0xf]
    %v170 = vld [vmem:[#allocation5 + $0xc0] sm:$0xf]
    %v171 = vld [vmem:[#allocation5 + $0xc4] sm:$0xf]
    %v172 = vld [vmem:[#allocation5 + $0xc8] sm:$0xf]
    %v173 = vld [vmem:[#allocation5 + $0xcc] sm:$0xf]
    %v174 = vld [vmem:[#allocation5 + $0xd0] sm:$0xf]
    %v175 = vld [vmem:[#allocation5 + $0xd4] sm:$0xf]
    %v176 = vld [vmem:[#allocation5 + $0xd8] sm:$0xf]
    %v177 = vld [vmem:[#allocation5 + $0xdc] sm:$0xf]
    %v178 = vld [vmem:[#allocation5 + $0xe0] sm:$0xf]
    %v179 = vld [vmem:[#allocation5 + $0xe4] sm:$0xf]
    %v180 = vld [vmem:[#allocation5 + $0xe8] sm:$0xf]
    %v181 = vld [vmem:[#allocation5 + $0xec] sm:$0xf]
    %v182 = vld [vmem:[#allocation5 + $0xf0] sm:$0xf]
    %v183 = vld [vmem:[#allocation5 + $0xf4] sm:$0xf]
    %v184 = vld [vmem:[#allocation5 + $0xf8] sm:$0xf]
    %v185 = vld [vmem:[#allocation5 + $0xfc] sm:$0xf]
    %v186 = vld [vmem:[#allocation5 + $0x100] sm:$0xf]
    %v187 = vld [vmem:[#allocation5 + $0x104] sm:$0xf]
    %v188 = vld [vmem:[#allocation5 + $0x108] sm:$0xf]
    %v189 = vld [vmem:[#allocation5 + $0x10c] sm:$0xf]
    %v190 = vld [vmem:[#allocation5 + $0x110] sm:$0xf]
    %v191 = vld [vmem:[#allocation5 + $0x114] sm:$0xf]
    %v192 = vld [vmem:[#allocation5 + $0x118] sm:$0xf]
    %v193 = vld [vmem:[#allocation5 + $0x11c] sm:$0xf]
    %v194 = vld [vmem:[#allocation5 + $0x120] sm:$0xf]
    %v195 = vld [vmem:[#allocation5 + $0x124] sm:$0xf]
    %v196 = vld [vmem:[#allocation5 + $0x128] sm:$0xf]
    %v197 = vld [vmem:[#allocation5 + $0x12c] sm:$0xf]
    %v198 = vld [vmem:[#allocation5 + $0x130] sm:$0xf]
    %v199 = vld [vmem:[#allocation5 + $0x134] sm:$0xf]
    %v200 = vld [vmem:[#allocation5 + $0x138] sm:$0xf]
    %v201 = vld [vmem:[#allocation5 + $0x13c] sm:$0xf]
    %v202 = vld [vmem:[#allocation5 + $0x140] sm:$0xf]
    %v203 = vld [vmem:[#allocation5 + $0x144] sm:$0xf]
    %v204 = vld [vmem:[#allocation5 + $0x148] sm:$0xf]
    %v205 = vld [vmem:[#allocation5 + $0x14c] sm:$0xf]
    %v206 = vld [vmem:[#allocation5 + $0x150] sm:$0xf]
    %v207 = vld [vmem:[#allocation5 + $0x154] sm:$0xf]
    %v208 = vld [vmem:[#allocation5 + $0x158] sm:$0xf]
    %v209 = vld [vmem:[#allocation5 + $0x15c] sm:$0xf]
    %v210 = vld [vmem:[#allocation5 + $0x160] sm:$0xf]
    %v211 = vld [vmem:[#allocation5 + $0x164] sm:$0xf]
    %v212 = vld [vmem:[#allocation5 + $0x168] sm:$0xf]
    %v213 = vld [vmem:[#allocation5 + $0x16c] sm:$0xf]
    %v214 = vld [vmem:[#allocation5 + $0x170] sm:$0xf]
    %v215 = vld [vmem:[#allocation5 + $0x174] sm:$0xf]
    %v216 = vld [vmem:[#allocation5 + $0x178] sm:$0xf]
    %v217 = vld [vmem:[#allocation5 + $0x17c] sm:$0xf]
    %v218 = vld [vmem:[#allocation5 + $0x180] sm:$0xf]
    %v219 = vld [vmem:[#allocation5 + $0x184] sm:$0xf]
    %v220 = vld [vmem:[#allocation5 + $0x188] sm:$0xf]
    %v221 = vld [vmem:[#allocation5 + $0x18c] sm:$0xf]
    %v222 = vld [vmem:[#allocation5 + $0x190] sm:$0xf]
    %v223 = vld [vmem:[#allocation5 + $0x194] sm:$0xf]
    %v224 = vld [vmem:[#allocation5 + $0x198] sm:$0xf]
    %v225 = vld [vmem:[#allocation5 + $0x19c] sm:$0xf]
    %v226 = vld [vmem:[#allocation5 + $0x1a0] sm:$0xf]
    %v227 = vld [vmem:[#allocation5 + $0x1a4] sm:$0xf]
    %v228 = vld [vmem:[#allocation5 + $0x1a8] sm:$0xf]
    %v229 = vld [vmem:[#allocation5 + $0x1ac] sm:$0xf]
    %v230 = vld [vmem:[#allocation5 + $0x1b0] sm:$0xf]
    %v231 = vld [vmem:[#allocation5 + $0x1b4] sm:$0xf]
    %v232 = vld [vmem:[#allocation5 + $0x1b8] sm:$0xf]
    %v233 = vld [vmem:[#allocation5 + $0x1bc] sm:$0xf]
    %v234 = vld [vmem:[#allocation5 + $0x1c0] sm:$0xf]
    %v235 = vld [vmem:[#allocation5 + $0x1c4] sm:$0xf]
    %v236 = vld [vmem:[#allocation5 + $0x1c8] sm:$0xf]
    %v237 = vld [vmem:[#allocation5 + $0x1cc] sm:$0xf]
    %v238 = vld [vmem:[#allocation5 + $0x1d0] sm:$0xf]
    %v239 = vld [vmem:[#allocation5 + $0x1d4] sm:$0xf]
    %v240 = vld [vmem:[#allocation5 + $0x1d8] sm:$0xf]
    %v241 = vld [vmem:[#allocation5 + $0x1dc] sm:$0xf]
    %v242 = vld [vmem:[#allocation5 + $0x1e0] sm:$0xf]
    %v243 = vld [vmem:[#allocation5 + $0x1e4] sm:$0xf]
    %v244 = vld [vmem:[#allocation5 + $0x1e8] sm:$0xf]
    %v245 = vld [vmem:[#allocation5 + $0x1ec] sm:$0xf]
    %v246 = vld [vmem:[#allocation5 + $0x1f0] sm:$0xf]
    %v247 = vld [vmem:[#allocation5 + $0x1f4] sm:$0xf]
    %v248 = vld [vmem:[#allocation5 + $0x1f8] sm:$0xf]
    %v249 = vld [vmem:[#allocation5 + $0x1fc] sm:$0xf]
    %v250 = vld [vmem:[%s2] sm:$0x1]
    %v252 = vlaneseq
    %v253 = vshrl.u32 %v252, 7
    %v254 = vsub.s32 0, %v253
    %v255 = vrot.slane %v250, %v254
    %v385 = vunpack.c.l.b16 %v122
    %v386 = vunpack.c.l.b16 %v123
    %v387 = vunpack.c.l.b16 %v124
    %v388 = vunpack.c.l.b16 %v125
    %v389 = vunpack.c.l.b16 %v126
    %v390 = vunpack.c.l.b16 %v127
    %v391 = vunpack.c.l.b16 %v128
    %v392 = vunpack.c.l.b16 %v129
    %v393 = vunpack.c.l.b16 %v130
    %v394 = vunpack.c.l.b16 %v131
    %v395 = vunpack.c.l.b16 %v132
    %v396 = vunpack.c.l.b16 %v133
    %v397 = vunpack.c.l.b16 %v134
    %v398 = vunpack.c.l.b16 %v135
    %v399 = vunpack.c.l.b16 %v136
    %v400 = vunpack.c.l.b16 %v137
    %v401 = vunpack.c.l.b16 %v138
    %v402 = vunpack.c.l.b16 %v139
    %v403 = vunpack.c.l.b16 %v140
    %v404 = vunpack.c.l.b16 %v141
    %v405 = vunpack.c.l.b16 %v142
    %v406 = vunpack.c.l.b16 %v143
    %v407 = vunpack.c.l.b16 %v144
    %v408 = vunpack.c.l.b16 %v145
    %v409 = vunpack.c.l.b16 %v146
    %v410 = vunpack.c.l.b16 %v147
    %v411 = vunpack.c.l.b16 %v148
    %v412 = vunpack.c.l.b16 %v149
    %v413 = vunpack.c.l.b16 %v150
    %v414 = vunpack.c.l.b16 %v151
    %v415 = vunpack.c.l.b16 %v152
    %v416 = vunpack.c.l.b16 %v153
    %v417 = vunpack.c.l.b16 %v154
    %v418 = vunpack.c.l.b16 %v155
    %v419 = vunpack.c.l.b16 %v156
    %v420 = vunpack.c.l.b16 %v157
    %v421 = vunpack.c.l.b16 %v158
    %v422 = vunpack.c.l.b16 %v159
    %v423 = vunpack.c.l.b16 %v160
    %v424 = vunpack.c.l.b16 %v161
    %v425 = vunpack.c.l.b16 %v162
    %v426 = vunpack.c.l.b16 %v163
    %v427 = vunpack.c.l.b16 %v164
    %v428 = vunpack.c.l.b16 %v165
    %v429 = vunpack.c.l.b16 %v166
    %v430 = vunpack.c.l.b16 %v167
    %v431 = vunpack.c.l.b16 %v168
    %v432 = vunpack.c.l.b16 %v169
    %v433 = vunpack.c.l.b16 %v170
    %v434 = vunpack.c.l.b16 %v171
    %v435 = vunpack.c.l.b16 %v172
    %v436 = vunpack.c.l.b16 %v173
    %v437 = vunpack.c.l.b16 %v174
    %v438 = vunpack.c.l.b16 %v175
    %v439 = vunpack.c.l.b16 %v176
    %v440 = vunpack.c.l.b16 %v177
    %v441 = vunpack.c.l.b16 %v178
    %v442 = vunpack.c.l.b16 %v179
    %v443 = vunpack.c.l.b16 %v180
    %v444 = vunpack.c.l.b16 %v181
    %v445 = vunpack.c.l.b16 %v182
    %v446 = vunpack.c.l.b16 %v183
    %v447 = vunpack.c.l.b16 %v184
    %v448 = vunpack.c.l.b16 %v185
    %v449 = vunpack.c.l.b16 %v186
    %v450 = vunpack.c.l.b16 %v187
    %v451 = vunpack.c.l.b16 %v188
    %v452 = vunpack.c.l.b16 %v189
    %v453 = vunpack.c.l.b16 %v190
    %v454 = vunpack.c.l.b16 %v191
    %v455 = vunpack.c.l.b16 %v192
    %v456 = vunpack.c.l.b16 %v193
    %v457 = vunpack.c.l.b16 %v194
    %v458 = vunpack.c.l.b16 %v195
    %v459 = vunpack.c.l.b16 %v196
    %v460 = vunpack.c.l.b16 %v197
    %v461 = vunpack.c.l.b16 %v198
    %v462 = vunpack.c.l.b16 %v199
    %v463 = vunpack.c.l.b16 %v200
    %v464 = vunpack.c.l.b16 %v201
    %v465 = vunpack.c.l.b16 %v202
    %v466 = vunpack.c.l.b16 %v203
    %v467 = vunpack.c.l.b16 %v204
    %v468 = vunpack.c.l.b16 %v205
    %v469 = vunpack.c.l.b16 %v206
    %v470 = vunpack.c.l.b16 %v207
    %v471 = vunpack.c.l.b16 %v208
    %v472 = vunpack.c.l.b16 %v209
    %v473 = vunpack.c.l.b16 %v210
    %v474 = vunpack.c.l.b16 %v211
    %v475 = vunpack.c.l.b16 %v212
    %v476 = vunpack.c.l.b16 %v213
    %v477 = vunpack.c.l.b16 %v214
    %v478 = vunpack.c.l.b16 %v215
    %v479 = vunpack.c.l.b16 %v216
    %v480 = vunpack.c.l.b16 %v217
    %v481 = vunpack.c.l.b16 %v218
    %v482 = vunpack.c.l.b16 %v219
    %v483 = vunpack.c.l.b16 %v220
    %v484 = vunpack.c.l.b16 %v221
    %v485 = vunpack.c.l.b16 %v222
    %v486 = vunpack.c.l.b16 %v223
    %v487 = vunpack.c.l.b16 %v224
    %v488 = vunpack.c.l.b16 %v225
    %v489 = vunpack.c.l.b16 %v226
    %v490 = vunpack.c.l.b16 %v227
    %v491 = vunpack.c.l.b16 %v228
    %v492 = vunpack.c.l.b16 %v229
    %v493 = vunpack.c.l.b16 %v230
    %v494 = vunpack.c.l.b16 %v231
    %v495 = vunpack.c.l.b16 %v232
    %v496 = vunpack.c.l.b16 %v233
    %v497 = vunpack.c.l.b16 %v234
    %v498 = vunpack.c.l.b16 %v235
    %v499 = vunpack.c.l.b16 %v236
    %v500 = vunpack.c.l.b16 %v237
    %v501 = vunpack.c.l.b16 %v238
    %v502 = vunpack.c.l.b16 %v239
    %v503 = vunpack.c.l.b16 %v240
    %v504 = vunpack.c.l.b16 %v241
    %v505 = vunpack.c.l.b16 %v242
    %v506 = vunpack.c.l.b16 %v243
    %v507 = vunpack.c.l.b16 %v244
    %v508 = vunpack.c.l.b16 %v245
    %v509 = vunpack.c.l.b16 %v246
    %v510 = vunpack.c.l.b16 %v247
    %v511 = vunpack.c.l.b16 %v248
    %v512 = vunpack.c.l.b16 %v249
    %v513 = vpack.c.b16 %v386, %v385
    %v514 = vpack.c.b16 %v388, %v387
    %v515 = vpack.c.b16 %v390, %v389
    %v516 = vpack.c.b16 %v392, %v391
    %v517 = vpack.c.b16 %v394, %v393
    %v518 = vpack.c.b16 %v396, %v395
    %v519 = vpack.c.b16 %v398, %v397
    %v520 = vpack.c.b16 %v400, %v399
    %v521 = vpack.c.b16 %v402, %v401
    %v522 = vpack.c.b16 %v404, %v403
    %v523 = vpack.c.b16 %v406, %v405
    %v524 = vpack.c.b16 %v408, %v407
    %v525 = vpack.c.b16 %v410, %v409
    %v526 = vpack.c.b16 %v412, %v411
    %v527 = vpack.c.b16 %v414, %v413
    %v528 = vpack.c.b16 %v416, %v415
    %v529 = vpack.c.b16 %v418, %v417
    %v530 = vpack.c.b16 %v420, %v419
    %v531 = vpack.c.b16 %v422, %v421
    %v532 = vpack.c.b16 %v424, %v423
    %v533 = vpack.c.b16 %v426, %v425
    %v534 = vpack.c.b16 %v428, %v427
    %v535 = vpack.c.b16 %v430, %v429
    %v536 = vpack.c.b16 %v432, %v431
    %v537 = vpack.c.b16 %v434, %v433
    %v538 = vpack.c.b16 %v436, %v435
    %v539 = vpack.c.b16 %v438, %v437
    %v540 = vpack.c.b16 %v440, %v439
    %v541 = vpack.c.b16 %v442, %v441
    %v542 = vpack.c.b16 %v444, %v443
    %v543 = vpack.c.b16 %v446, %v445
    %v544 = vpack.c.b16 %v448, %v447
    %v545 = vpack.c.b16 %v450, %v449
    %v546 = vpack.c.b16 %v452, %v451
    %v547 = vpack.c.b16 %v454, %v453
    %v548 = vpack.c.b16 %v456, %v455
    %v549 = vpack.c.b16 %v458, %v457
    %v550 = vpack.c.b16 %v460, %v459
    %v551 = vpack.c.b16 %v462, %v461
    %v552 = vpack.c.b16 %v464, %v463
    %v553 = vpack.c.b16 %v466, %v465
    %v554 = vpack.c.b16 %v468, %v467
    %v555 = vpack.c.b16 %v470, %v469
    %v556 = vpack.c.b16 %v472, %v471
    %v557 = vpack.c.b16 %v474, %v473
    %v558 = vpack.c.b16 %v476, %v475
    %v559 = vpack.c.b16 %v478, %v477
    %v560 = vpack.c.b16 %v480, %v479
    %v561 = vpack.c.b16 %v482, %v481
    %v562 = vpack.c.b16 %v484, %v483
    %v563 = vpack.c.b16 %v486, %v485
    %v564 = vpack.c.b16 %v488, %v487
    %v565 = vpack.c.b16 %v490, %v489
    %v566 = vpack.c.b16 %v492, %v491
    %v567 = vpack.c.b16 %v494, %v493
    %v568 = vpack.c.b16 %v496, %v495
    %v569 = vpack.c.b16 %v498, %v497
    %v570 = vpack.c.b16 %v500, %v499
    %v571 = vpack.c.b16 %v502, %v501
    %v572 = vpack.c.b16 %v504, %v503
    %v573 = vpack.c.b16 %v506, %v505
    %v574 = vpack.c.b16 %v508, %v507
    %v575 = vpack.c.b16 %v510, %v509
    %v576 = vpack.c.b16 %v512, %v511
    %641 = vmatprep.subr.bf16.mxu0 0
    %642 = vmatpush1.bf16.msra.mxu0 %v513
    %643 = vmatprep.subr.bf16.mxu0 0
    %644 = vmatpush1.bf16.msra.mxu0 %v514
    %645 = vmatprep.subr.bf16.mxu0 0
    %646 = vmatpush1.bf16.msra.mxu0 %v515
    %647 = vmatprep.subr.bf16.mxu0 0
    %648 = vmatpush1.bf16.msra.mxu0 %v516
    %649 = vmatprep.subr.bf16.mxu0 0
    %650 = vmatpush1.bf16.msra.mxu0 %v517
    %651 = vmatprep.subr.bf16.mxu0 0
    %652 = vmatpush1.bf16.msra.mxu0 %v518
    %653 = vmatprep.subr.bf16.mxu0 0
    %654 = vmatpush1.bf16.msra.mxu0 %v519
    %655 = vmatprep.subr.bf16.mxu0 0
    %656 = vmatpush1.bf16.msra.mxu0 %v520
    %657 = vmatprep.subr.bf16.mxu0 0
    %658 = vmatpush1.bf16.msra.mxu0 %v521
    %659 = vmatprep.subr.bf16.mxu0 0
    %660 = vmatpush1.bf16.msra.mxu0 %v522
    %661 = vmatprep.subr.bf16.mxu0 0
    %662 = vmatpush1.bf16.msra.mxu0 %v523
    %663 = vmatprep.subr.bf16.mxu0 0
    %664 = vmatpush1.bf16.msra.mxu0 %v524
    %665 = vmatprep.subr.bf16.mxu0 0
    %666 = vmatpush1.bf16.msra.mxu0 %v525
    %667 = vmatprep.subr.bf16.mxu0 0
    %668 = vmatpush1.bf16.msra.mxu0 %v526
    %669 = vmatprep.subr.bf16.mxu0 0
    %670 = vmatpush1.bf16.msra.mxu0 %v527
    %671 = vmatprep.subr.bf16.mxu0 0
    %672 = vmatpush1.bf16.msra.mxu0 %v528
    %673 = vmatprep.mubr.bf16.mxu0 %v115
    %674 = vmatmul.mubr.bf16.gmra.mrb[0].mxu0 %v114
    %v675 = vpop.f32.mrb[0].mxu0
    %v676 = vadd.f32 %v255, %v675
    %v677 = vpop.f32.mrb[0].mxu0
    %v678 = vpop.f32.mrb[0].mxu0
    %v679 = vpop.f32.mrb[0].mxu0
    %680 = vdwg.mxu0
    %681 = vmatprep.subr.bf16.mxu0 0
    %682 = vmatpush1.bf16.msra.mxu0 %v529
    %683 = vmatprep.subr.bf16.mxu0 0
    %684 = vmatpush1.bf16.msra.mxu0 %v530
    %685 = vmatprep.subr.bf16.mxu0 0
    %686 = vmatpush1.bf16.msra.mxu0 %v531
    %687 = vmatprep.subr.bf16.mxu0 0
    %688 = vmatpush1.bf16.msra.mxu0 %v532
    %689 = vmatprep.subr.bf16.mxu0 0
    %690 = vmatpush1.bf16.msra.mxu0 %v533
    %691 = vmatprep.subr.bf16.mxu0 0
    %692 = vmatpush1.bf16.msra.mxu0 %v534
    %693 = vmatprep.subr.bf16.mxu0 0
    %694 = vmatpush1.bf16.msra.mxu0 %v535
    %695 = vmatprep.subr.bf16.mxu0 0
    %696 = vmatpush1.bf16.msra.mxu0 %v536
    %697 = vmatprep.subr.bf16.mxu0 0
    %698 = vmatpush1.bf16.msra.mxu0 %v537
    %699 = vmatprep.subr.bf16.mxu0 0
    %700 = vmatpush1.bf16.msra.mxu0 %v538
    %701 = vmatprep.subr.bf16.mxu0 0
    %702 = vmatpush1.bf16.msra.mxu0 %v539
    %703 = vmatprep.subr.bf16.mxu0 0
    %704 = vmatpush1.bf16.msra.mxu0 %v540
    %705 = vmatprep.subr.bf16.mxu0 0
    %706 = vmatpush1.bf16.msra.mxu0 %v541
    %707 = vmatprep.subr.bf16.mxu0 0
    %708 = vmatpush1.bf16.msra.mxu0 %v542
    %709 = vmatprep.subr.bf16.mxu0 0
    %710 = vmatpush1.bf16.msra.mxu0 %v543
    %711 = vmatprep.subr.bf16.mxu0 0
    %712 = vmatpush1.bf16.msra.mxu0 %v544
    %713 = vmatprep.mubr.bf16.mxu0 %v117
    %714 = vmatmul.mubr.bf16.gmra.mrb[0].mxu0 %v116
    %v715 = vpop.f32.mrb[0].mxu0
    %v716 = vadd.f32 %v676, %v715
    %v717 = vpop.f32.mrb[0].mxu0
    %v718 = vpop.f32.mrb[0].mxu0
    %v719 = vpop.f32.mrb[0].mxu0
    %720 = vdwg.mxu0
    %721 = vmatprep.subr.bf16.mxu0 0
    %722 = vmatpush1.bf16.msra.mxu0 %v545
    %723 = vmatprep.subr.bf16.mxu0 0
    %724 = vmatpush1.bf16.msra.mxu0 %v546
    %725 = vmatprep.subr.bf16.mxu0 0
    %726 = vmatpush1.bf16.msra.mxu0 %v547
    %727 = vmatprep.subr.bf16.mxu0 0
    %728 = vmatpush1.bf16.msra.mxu0 %v548
    %729 = vmatprep.subr.bf16.mxu0 0
    %730 = vmatpush1.bf16.msra.mxu0 %v549
    %731 = vmatprep.subr.bf16.mxu0 0
    %732 = vmatpush1.bf16.msra.mxu0 %v550
    %733 = vmatprep.subr.bf16.mxu0 0
    %734 = vmatpush1.bf16.msra.mxu0 %v551
    %735 = vmatprep.subr.bf16.mxu0 0
    %736 = vmatpush1.bf16.msra.mxu0 %v552
    %737 = vmatprep.subr.bf16.mxu0 0
    %738 = vmatpush1.bf16.msra.mxu0 %v553
    %739 = vmatprep.subr.bf16.mxu0 0
    %740 = vmatpush1.bf16.msra.mxu0 %v554
    %741 = vmatprep.subr.bf16.mxu0 0
    %742 = vmatpush1.bf16.msra.mxu0 %v555
    %743 = vmatprep.subr.bf16.mxu0 0
    %744 = vmatpush1.bf16.msra.mxu0 %v556
    %745 = vmatprep.subr.bf16.mxu0 0
    %746 = vmatpush1.bf16.msra.mxu0 %v557
    %747 = vmatprep.subr.bf16.mxu0 0
    %748 = vmatpush1.bf16.msra.mxu0 %v558
    %749 = vmatprep.subr.bf16.mxu0 0
    %750 = vmatpush1.bf16.msra.mxu0 %v559
    %751 = vmatprep.subr.bf16.mxu0 0
    %752 = vmatpush1.bf16.msra.mxu0 %v560
    %753 = vmatprep.mubr.bf16.mxu0 %v119
    %754 = vmatmul.mubr.bf16.gmra.mrb[0].mxu0 %v118
    %v755 = vpop.f32.mrb[0].mxu0
    %v756 = vadd.f32 %v716, %v755
    %v757 = vpop.f32.mrb[0].mxu0
    %v758 = vpop.f32.mrb[0].mxu0
    %v759 = vpop.f32.mrb[0].mxu0
    %760 = vdwg.mxu0
    %761 = vmatprep.subr.bf16.mxu0 0
    %762 = vmatpush1.bf16.msra.mxu0 %v561
    %763 = vmatprep.subr.bf16.mxu0 0
    %764 = vmatpush1.bf16.msra.mxu0 %v562
    %765 = vmatprep.subr.bf16.mxu0 0
    %766 = vmatpush1.bf16.msra.mxu0 %v563
    %767 = vmatprep.subr.bf16.mxu0 0
    %768 = vmatpush1.bf16.msra.mxu0 %v564
    %769 = vmatprep.subr.bf16.mxu0 0
    %770 = vmatpush1.bf16.msra.mxu0 %v565
    %771 = vmatprep.subr.bf16.mxu0 0
    %772 = vmatpush1.bf16.msra.mxu0 %v566
    %773 = vmatprep.subr.bf16.mxu0 0
    %774 = vmatpush1.bf16.msra.mxu0 %v567
    %775 = vmatprep.subr.bf16.mxu0 0
    %776 = vmatpush1.bf16.msra.mxu0 %v568
    %777 = vmatprep.subr.bf16.mxu0 0
    %778 = vmatpush1.bf16.msra.mxu0 %v569
    %779 = vmatprep.subr.bf16.mxu0 0
    %780 = vmatpush1.bf16.msra.mxu0 %v570
    %781 = vmatprep.subr.bf16.mxu0 0
    %782 = vmatpush1.bf16.msra.mxu0 %v571
    %783 = vmatprep.subr.bf16.mxu0 0
    %784 = vmatpush1.bf16.msra.mxu0 %v572
    %785 = vmatprep.subr.bf16.mxu0 0
    %786 = vmatpush1.bf16.msra.mxu0 %v573
    %787 = vmatprep.subr.bf16.mxu0 0
    %788 = vmatpush1.bf16.msra.mxu0 %v574
    %789 = vmatprep.subr.bf16.mxu0 0
    %790 = vmatpush1.bf16.msra.mxu0 %v575
    %791 = vmatprep.subr.bf16.mxu0 0
    %792 = vmatpush1.bf16.msra.mxu0 %v576
    %793 = vmatprep.mubr.bf16.mxu0 %v121
    %794 = vmatmul.mubr.bf16.gmra.mrb[0].mxu0 %v120
    %v795 = vpop.f32.mrb[0].mxu0
    %v796 = vadd.f32 %v756, %v795
    %v797 = vpop.f32.mrb[0].mxu0
    %v798 = vpop.f32.mrb[0].mxu0
    %v799 = vpop.f32.mrb[0].mxu0
    %800 = vdwg.mxu0
    %v801 = vmax.f32 %v796, 0.0
    %v802 = vld [vmem:[#allocation7] sm:$0xff]
    %v803 = vld [vmem:[#allocation7 + $0x8] sm:$0xff]
    %v804 = vld [vmem:[#allocation7 + $0x10] sm:$0xff]
    %v805 = vld [vmem:[#allocation7 + $0x18] sm:$0xff]
    %v806 = vld [vmem:[#allocation7 + $0x20] sm:$0xff]
    %v807 = vld [vmem:[#allocation7 + $0x28] sm:$0xff]
    %v808 = vld [vmem:[#allocation7 + $0x30] sm:$0xff]
    %v809 = vld [vmem:[#allocation7 + $0x38] sm:$0xff]
    %v810 = vld [vmem:[#allocation7 + $0x40] sm:$0xff]
    %v811 = vld [vmem:[#allocation7 + $0x48] sm:$0xff]
    %v812 = vld [vmem:[#allocation7 + $0x50] sm:$0xff]
    %v813 = vld [vmem:[#allocation7 + $0x58] sm:$0xff]
    %v814 = vld [vmem:[#allocation7 + $0x60] sm:$0xff]
    %v815 = vld [vmem:[#allocation7 + $0x68] sm:$0xff]
    %v816 = vld [vmem:[#allocation7 + $0x70] sm:$0xff]
    %v817 = vld [vmem:[#allocation7 + $0x78] sm:$0xff]
    %v818 = vld [vmem:[#allocation7 + $0x80] sm:$0xff]
    %v819 = vld [vmem:[#allocation7 + $0x88] sm:$0xff]
    %v820 = vld [vmem:[#allocation7 + $0x90] sm:$0xff]
    %v821 = vld [vmem:[#allocation7 + $0x98] sm:$0xff]
    %v822 = vld [vmem:[#allocation7 + $0xa0] sm:$0xff]
    %v823 = vld [vmem:[#allocation7 + $0xa8] sm:$0xff]
    %v824 = vld [vmem:[#allocation7 + $0xb0] sm:$0xff]
    %v825 = vld [vmem:[#allocation7 + $0xb8] sm:$0xff]
    %v826 = vld [vmem:[#allocation7 + $0xc0] sm:$0xff]
    %v827 = vld [vmem:[#allocation7 + $0xc8] sm:$0xff]
    %v828 = vld [vmem:[#allocation7 + $0xd0] sm:$0xff]
    %v829 = vld [vmem:[#allocation7 + $0xd8] sm:$0xff]
    %v830 = vld [vmem:[#allocation7 + $0xe0] sm:$0xff]
    %v831 = vld [vmem:[#allocation7 + $0xe8] sm:$0xff]
    %v832 = vld [vmem:[#allocation7 + $0xf0] sm:$0xff]
    %v833 = vld [vmem:[#allocation7 + $0xf8] sm:$0xff]
    %v834 = vld [vmem:[%s4] sm:$0x3]
    %v836 = vlaneseq
    %v837 = vshrl.u32 %v836, 7
    %v838 = vsub.s32 0, %v837
    %v839 = vrot.slane %v834, %v838
    %v840 = vlaneseq
    %v841 = vshrl.u32 %v840, 7
    %v842 = vsub.s32 1, %v841
    %v843 = vrot.slane %v834, %v842
    %846 = vmatprep.subr.mxu0 %v803
    %847 = vmatpush1.msra.mxu0 %v802
    %848 = vmatprep.subr.mxu0 %v805
    %849 = vmatpush1.msra.mxu0 %v804
    %850 = vmatprep.subr.mxu0 %v807
    %851 = vmatpush1.msra.mxu0 %v806
    %852 = vmatprep.subr.mxu0 %v809
    %853 = vmatpush1.msra.mxu0 %v808
    %854 = vmatprep.subr.mxu0 %v811
    %855 = vmatpush1.msra.mxu0 %v810
    %856 = vmatprep.subr.mxu0 %v813
    %857 = vmatpush1.msra.mxu0 %v812
    %858 = vmatprep.subr.mxu0 %v815
    %859 = vmatpush1.msra.mxu0 %v814
    %860 = vmatprep.subr.mxu0 %v817
    %861 = vmatpush1.msra.mxu0 %v816
    %862 = vmatprep.subr.mxu0 %v819
    %863 = vmatpush1.msra.mxu0 %v818
    %864 = vmatprep.subr.mxu0 %v821
    %865 = vmatpush1.msra.mxu0 %v820
    %866 = vmatprep.subr.mxu0 %v823
    %867 = vmatpush1.msra.mxu0 %v822
    %868 = vmatprep.subr.mxu0 %v825
    %869 = vmatpush1.msra.mxu0 %v824
    %870 = vmatprep.subr.mxu0 %v827
    %871 = vmatpush1.msra.mxu0 %v826
    %872 = vmatprep.subr.mxu0 %v829
    %873 = vmatpush1.msra.mxu0 %v828
    %874 = vmatprep.subr.mxu0 %v831
    %875 = vmatpush1.msra.mxu0 %v830
    %876 = vmatprep.subr.mxu0 %v833
    %877 = vmatpush1.msra.mxu0 %v832
    %878 = vmatprep.subr.mxu0 0.0
    %879 = vmatpush1.msra.mxu0 0.0
    %880 = vmatprep.subr.mxu0 0.0
    %881 = vmatpush1.msra.mxu0 0.0
    %882 = vmatprep.subr.mxu0 0.0
    %883 = vmatpush1.msra.mxu0 0.0
    %884 = vmatprep.subr.mxu0 0.0
    %885 = vmatpush1.msra.mxu0 0.0
    %886 = vmatprep.subr.mxu0 0.0
    %887 = vmatpush1.msra.mxu0 0.0
    %888 = vmatprep.subr.mxu0 0.0
    %889 = vmatpush1.msra.mxu0 0.0
    %890 = vmatprep.subr.mxu0 0.0
    %891 = vmatpush1.msra.mxu0 0.0
    %892 = vmatprep.subr.mxu0 0.0
    %893 = vmatpush1.msra.mxu0 0.0
    %894 = vmatprep.subr.mxu0 0.0
    %895 = vmatpush1.msra.mxu0 0.0
    %896 = vmatprep.subr.mxu0 0.0
    %897 = vmatpush1.msra.mxu0 0.0
    %898 = vmatprep.subr.mxu0 0.0
    %899 = vmatpush1.msra.mxu0 0.0
    %900 = vmatprep.subr.mxu0 0.0
    %901 = vmatpush1.msra.mxu0 0.0
    %902 = vmatprep.subr.mxu0 0.0
    %903 = vmatpush1.msra.mxu0 0.0
    %904 = vmatprep.subr.mxu0 0.0
    %905 = vmatpush1.msra.mxu0 0.0
    %906 = vmatprep.subr.mxu0 0.0
    %907 = vmatpush1.msra.mxu0 0.0
    %908 = vmatprep.subr.mxu0 0.0
    %909 = vmatpush1.msra.mxu0 0.0
    %910 = vmatprep.mubr.f32.mxu0 0.0
    %911 = vmatmul.mubr.f32.gmra.mrb[0].mxu0 %v801
    %v912 = vpop.f32.mrb[0].mxu0
    %v913 = vadd.f32 %v839, %v912
    %v914 = vpop.f32.mrb[0].mxu0
    %v915 = vadd.f32 %v843, %v914
    %916 = vdwg.mxu0
    %v917 = vmul.f32 %v915, 1.442695
    %v918 = vpow.pop %v917
    %919 = vst [vmem:[#allocation9] sm:$0x3] %v913
    %v920 = vld [vmem:[%s5] sm:$0x3]
    %v921 = vmul.f32 %v918, %v920
    %v922 = vadd.f32 %v913, %v921
    %923 = vst [vmem:[#allocation8] sm:$0x3] %v922
    %v924 = vlaneseq
    %v925 = vand.u32 %v924, 127
    %vm926 = vcmp.lt.s32.totalorder %v925, 3
    %v927 = vmul.f32 %v918, %v918
    %v928 = vmul.f32 %v913, %v913
    %v929 = vadd.f32 %v927, %v928
    %v930 = vsub.f32 %v929, %v915
    %v931 = vsub.f32 %v930, 0.5
    %v932 = vsel %vm926, %v931, 0.0
    %vm933 = vcmask 1041408
    %v934 = vsel %vm933, %v932, 0.0
    %v935 = vrot.slane %v934, 4
    %v936 = vadd.f32 %v934, %v935
    %v937 = vrot.slane %v936, 2
    %v938 = vadd.f32 %v936, %v937
    %v939 = vrot.slane %v938, 1
    %v940 = vadd.f32 %v938, %v939
    %941 = vst [vmem:[#allocation11] sm:$0xff] %v940
    // Predicated region
    $region38: #{tpu_custom_call.1} parent=1 // pred_check
      _
    $region39: #{tpu_custom_call.1} parent=1 // pred_check_branch
      %943 = sbr.rel (0) target = $region41
    $region40: #{tpu_custom_call.1} parent=1 // pred_region
      %s945 = ssub.s32 32, 32
      %946 = vsyncadd [#allocation4], %s945
      %s948 = sshll.u32 [#allocation8], 4
      %s949 = int_to_ptr.vmem [resolvable:$true] %s948
      %951 = dma.vmem_to_hbm [thread:$0]  %s949, 32, %s6, [#allocation4]
    $region41: #{tpu_custom_call.1} parent=1 // pred_fallthru
      _
    // Predicated region
    $region42: #{tpu_custom_call.1} parent=1 // pred_check
      _
    $region43: #{tpu_custom_call.1} parent=1 // pred_check_branch
      %953 = sbr.rel (0) target = $region45
    $region44: #{tpu_custom_call.1} parent=1 // pred_region
      %s955 = ssub.s32 32, 32
      %956 = vsyncadd [#allocation10], %s955
      %s958 = sshll.u32 [#allocation9], 4
      %s959 = int_to_ptr.vmem [resolvable:$true] %s958
      %961 = dma.vmem_to_hbm [thread:$0]  %s959, 32, %s7, [#allocation10]
    $region45: #{tpu_custom_call.1} parent=1 // pred_fallthru
      _
    // Predicated region
    $region46: #{tpu_custom_call.1} parent=1 // pred_check
      _
    $region47: #{tpu_custom_call.1} parent=1 // pred_check_branch
      %963 = sbr.rel (0) target = $region49
    $region48: #{tpu_custom_call.1} parent=1 // pred_region
      %s965 = ssub.s32 128, 128
      %966 = vsyncadd [#allocation10], %s965
      %s968 = sshll.u32 [#allocation11], 4
      %s969 = int_to_ptr.vmem [resolvable:$true] %s968
      %971 = dma.vmem_to_hbm [thread:$0]  %s969, 128, %s8, [#allocation10]
    $region49: #{tpu_custom_call.1} parent=1 // pred_fallthru
      _
    // Predicated region
    $region50: #{tpu_custom_call.1} parent=1 // pred_check
      _
    $region51: #{tpu_custom_call.1} parent=1 // pred_check_branch
      %973 = sbr.rel (0) target = $region53
    $region52: #{tpu_custom_call.1} parent=1 // pred_region
      %974 = dma.done [#allocation4], 32
    $region53: #{tpu_custom_call.1} parent=1 // pred_fallthru
      _
    // Predicated region
    $region54: #{tpu_custom_call.1} parent=1 // pred_check
      _
    $region55: #{tpu_custom_call.1} parent=1 // pred_check_branch
      %976 = sbr.rel (0) target = $region57
    $region56: #{tpu_custom_call.1} parent=1 // pred_region
      %977 = dma.done [#allocation10], 32
    $region57: #{tpu_custom_call.1} parent=1 // pred_fallthru
      _
    // Predicated region
    $region58: #{tpu_custom_call.1} parent=1 // pred_check
      _
    $region59: #{tpu_custom_call.1} parent=1 // pred_check_branch
      %979 = sbr.rel (0) target = $region61
    $region60: #{tpu_custom_call.1} parent=1 // pred_region
      %980 = dma.done [#allocation10], 128
    $region61: #{tpu_custom_call.1} parent=1 // pred_fallthru
      _
    %981 = vsyncpa [#allocation3], 1
    %982 = vsyncpa [#allocation6], 1
    %983 = vsyncpa [#allocation4], 1
    %984 = vsyncpa [#allocation10], 1

</llo_original>
